<compile_context>
chip_gen: v7x
topology: tpu7x:2x2x1
jax: 0.10.0
libtpu: 0.0.40
codegen_flags: <defaults>
</compile_context>

<pallas_src>
import functools

import jax
import jax.numpy as jnp
from jax.experimental import pallas as pl
from jax.experimental.pallas import tpu as pltpu

IN_FEATURES = 64
HIDDEN = 200
HIDDEN_PAD = 256          # 200 padded to lane-dense 256 (2 full vregs); exact (zeros)
NUM_CLASSES = 10
MAX_BATCH_TILE = 8192     # VMEM cap: ~<20 MiB/step even with f32 epilogue (v7x-safe)


def _round_up(x, m):
    return ((x + m - 1) // m) * m


def _cdiv(a, b):
    return (a + b - 1) // b


def mlp_logsoftmax_kernel(x_ref, w1_ref, b1_ref, w2_ref, b2_ref, out_ref, *,
                          bf16_epilogue):
    # x_ref : (TB, 64)   f32      w1_ref: (64, 256)  bf16   b1_ref: (1, 256) f32
    # w2_ref: (256, 10)  bf16     b2_ref: (1, 10)    f32    out_ref: (TB, 10) f32

    # ----- in-kernel f32 -> bf16 cast of the streamed activations ----------
    x_bf = x_ref[...].astype(jnp.bfloat16)

    # ----- Linear 1 (bf16 MXU, f32 accumulate) ------------------------------
    h = jnp.dot(x_bf, w1_ref[...], preferred_element_type=jnp.float32)

    # ----- bias + ReLU epilogue ---------------------------------------------
    if bf16_epilogue:
        # bf16 VALU (v6e/v7x): halves VPU passes and the (TB,256) VMEM footprint.
        h_bf = jnp.maximum(h.astype(jnp.bfloat16) + b1_ref[...].astype(jnp.bfloat16),
                           0.0)
    else:
        # f32 epilogue for v5e (no bf16 VALU).
        h_bf = jnp.maximum(h + b1_ref[...], 0.0).astype(jnp.bfloat16)

    # ----- Dropout ----------------------------------------------------------
    # TODO(synk): training-mode dropout (p=0.1 with 1/(1-p) scaling) would use
    # pltpu.prng_seed + pltpu.stateful_bernoulli; eval-mode dropout is the identity.

    # ----- Linear 2 (bf16 MXU, f32 accumulate) + bias ------------------------
    # NOTE: N=10 output columns / K=64 input depth leave the MXU underutilized by
    # construction; do not lane-pad the HBM output (12.8x more writeback, no gain).
    y = jnp.dot(h_bf, w2_ref[...], preferred_element_type=jnp.float32) + b2_ref[...]

    # ----- log_softmax over dim=1 (class axis), f32, max-stabilized ----------
    m = jnp.max(y, axis=1, keepdims=True)
    z = y - m
    lse = jnp.log(jnp.sum(jnp.exp(z), axis=1, keepdims=True))
    out_ref[...] = (z - lse).astype(out_ref.dtype)


def prepare_params(w1, b1, w2, b2):
    """Pad hidden 200->256 and cast matmul weights to bf16.

    Inputs (f32): w1 (64, 200), b1 (200,), w2 (200, 10), b2 (10,)
    Padding is numerically exact: zero w1 cols, zero b1 pad, ReLU(0)=0, zero w2 rows.
    """
    w1p = jnp.zeros((IN_FEATURES, HIDDEN_PAD), jnp.float32).at[:, :HIDDEN].set(w1)
    b1p = jnp.zeros((1, HIDDEN_PAD), jnp.float32).at[:, :HIDDEN].set(b1)
    w2p = jnp.zeros((HIDDEN_PAD, NUM_CLASSES), jnp.float32).at[:HIDDEN, :].set(w2)
    b2p = b2.reshape(1, NUM_CLASSES).astype(jnp.float32)
    return (w1p.astype(jnp.bfloat16), b1p, w2p.astype(jnp.bfloat16), b2p)


@functools.partial(jax.jit, static_argnames=("batch_tile", "bf16_epilogue"))
def classification_forward(x, w1p, b1p, w2p, b2p, *, batch_tile=4096,
                           bf16_epilogue=True):
    """x: (B, 64) float32. Params from prepare_params. Returns (B, 10) log-probs."""
    B = x.shape[0]

    # Batch tile: big enough to amortize ~0.35 us/grid-step overhead, capped for
    # v7x VMEM, never larger than the (sublane-rounded) batch.
    TB = min(batch_tile, MAX_BATCH_TILE, _round_up(B, 8))
    if B <= TB and B > 8:
        # Keep >= 2 grid steps so v7x's two TensorCores both get work.
        TB = _round_up(_cdiv(B, 2), 8)
    grid = (_cdiv(B, TB),)   # no padding copy of x; last block may be partial

    kernel = functools.partial(mlp_logsoftmax_kernel, bf16_epilogue=bf16_epilogue)

    out = pl.pallas_call(
        kernel,
        out_shape=jax.ShapeDtypeStruct((B, NUM_CLASSES), jnp.float32),
        grid_spec=pltpu.PrefetchScalarGridSpec(
            num_scalar_prefetch=0,
            grid=grid,
            in_specs=[
                pl.BlockSpec((TB, IN_FEATURES), lambda i: (i, 0)),          # x stream
                pl.BlockSpec((IN_FEATURES, HIDDEN_PAD), lambda i: (0, 0)),  # w1 resident
                pl.BlockSpec((1, HIDDEN_PAD), lambda i: (0, 0)),            # b1 resident
                pl.BlockSpec((HIDDEN_PAD, NUM_CLASSES), lambda i: (0, 0)),  # w2 resident
                pl.BlockSpec((1, NUM_CLASSES), lambda i: (0, 0)),           # b2 resident
            ],
            out_specs=pl.BlockSpec((TB, NUM_CLASSES), lambda i: (i, 0)),
        ),
        compiler_params=pltpu.CompilerParams(
            dimension_semantics=("parallel",),
        ),
    )(x, w1p, b1p, w2p, b2p)

    return out


def init_params(key):
    """Deterministic init matching nn.Linear default (U(-1/sqrt(fan_in), +))."""
    k1, k2, k3, k4 = jax.random.split(key, 4)
    bound1 = 1.0 / jnp.sqrt(float(IN_FEATURES))
    bound2 = 1.0 / jnp.sqrt(float(HIDDEN))
    # Stored as (in_features, out_features) = transpose of PyTorch's (out, in).
    w1 = jax.random.uniform(k1, (IN_FEATURES, HIDDEN), jnp.float32, -bound1, bound1)
    b1 = jax.random.uniform(k2, (HIDDEN,), jnp.float32, -bound1, bound1)
    w2 = jax.random.uniform(k3, (HIDDEN, NUM_CLASSES), jnp.float32, -bound2, bound2)
    b2 = jax.random.uniform(k4, (NUM_CLASSES,), jnp.float32, -bound2, bound2)
    return w1, b1, w2, b2


def reference_forward_f32(x, w1, b1, w2, b2):
    """Pure-f32 reference (PyTorch eval-mode semantics)."""
    h = jnp.maximum(x @ w1 + b1, 0.0)
    y = h @ w2 + b2
    return jax.nn.log_softmax(y, axis=1)


def reference_forward_matched(x, w1, b1, w2, b2, *, bf16_epilogue=True):
    """Reference with the same bf16-operand / f32-accumulate precision as the kernel."""
    h = jnp.dot(x.astype(jnp.bfloat16), w1.astype(jnp.bfloat16),
                preferred_element_type=jnp.float32)
    if bf16_epilogue:
        h_bf = jnp.maximum(h.astype(jnp.bfloat16) + b1.astype(jnp.bfloat16), 0.0)
    else:
        h_bf = jnp.maximum(h + b1, 0.0).astype(jnp.bfloat16)
    y = jnp.dot(h_bf, w2.astype(jnp.bfloat16), preferred_element_type=jnp.float32)
    y = y + b2
    return jax.nn.log_softmax(y, axis=1)


if __name__ == "__main__":
    key = jax.random.PRNGKey(0)
    kx1, kx2, kp = jax.random.split(key, 3)

    w1, b1, w2, b2 = init_params(kp)
    w1p, b1p, w2p, b2p = prepare_params(w1, b1, w2, b2)

    # --- small batch (single-tile path), default bf16 epilogue ----------------
    B1 = 8
    x1 = jax.random.normal(kx1, (B1, IN_FEATURES), dtype=jnp.float32)
    out1 = jax.block_until_ready(classification_forward(x1, w1p, b1p, w2p, b2p))
    assert out1.shape == (B1, NUM_CLASSES)
    assert jnp.allclose(out1, reference_forward_matched(x1, w1, b1, w2, b2),
                        atol=5e-4, rtol=5e-4), "mismatch vs matched-precision reference"
    assert jnp.allclose(out1, reference_forward_f32(x1, w1, b1, w2, b2),
                        atol=5e-2, rtol=5e-2), "mismatch vs f32 reference"

    # --- same batch, f32 epilogue path (v5e configuration) --------------------
    out1b = jax.block_until_ready(
        classification_forward(x1, w1p, b1p, w2p, b2p, bf16_epilogue=False))
    assert jnp.allclose(
        out1b, reference_forward_matched(x1, w1, b1, w2, b2, bf16_epilogue=False),
        atol=5e-4, rtol=5e-4), "mismatch vs matched-precision reference (f32 epilogue)"

    # --- ragged batch exercising the multi-tile grid + partial last block -----
    B2 = 45   # TB becomes 24 -> grid=(2,), last block partial (no padding copy)
    x2 = jax.random.normal(kx2, (B2, IN_FEATURES), dtype=jnp.float32)
    out2 = jax.block_until_ready(classification_forward(x2, w1p, b1p, w2p, b2p))
    assert out2.shape == (B2, NUM_CLASSES)
    assert jnp.allclose(out2, reference_forward_matched(x2, w1, b1, w2, b2),
                        atol=5e-4, rtol=5e-4), "mismatch vs matched-precision reference"
    assert jnp.allclose(out2, reference_forward_f32(x2, w1, b1, w2, b2),
                        atol=5e-2, rtol=5e-2), "mismatch vs f32 reference"

    print("KERNEL_OK")
</pallas_src>

<mosaic_0001>
module attributes {stable_mosaic.version = 11 : i64} {
  func.func @mlp_logsoftmax_kernel(%arg0: i32, %arg1: memref<8x64xf32, #tpu.memory_space<vmem>>, %arg2: memref<64x256xbf16, #tpu.memory_space<vmem>>, %arg3: memref<1x256xf32, #tpu.memory_space<vmem>>, %arg4: memref<256x10xbf16, #tpu.memory_space<vmem>>, %arg5: memref<1x10xf32, #tpu.memory_space<vmem>>, %arg6: memref<8x10xf32, #tpu.memory_space<vmem>>) attributes {dimension_semantics = [#tpu.dimension_semantics<parallel>], iteration_bounds = array<i64: 1>, scalar_prefetch = 0 : i64, scratch_operands = 0 : i64, tpu.core_type = #tpu.core_type<tc>, window_params = [{transform_indices = @transform_0, window_bounds = array<i64: 8, 64>}, {pipeline_mode = #tpu.pipeline_mode<synchronous>, transform_indices = @transform_1, window_bounds = array<i64: 64, 256>}, {pipeline_mode = #tpu.pipeline_mode<synchronous>, transform_indices = @transform_2, window_bounds = array<i64: 1, 256>}, {pipeline_mode = #tpu.pipeline_mode<synchronous>, transform_indices = @transform_3, window_bounds = array<i64: 256, 10>}, {pipeline_mode = #tpu.pipeline_mode<synchronous>, transform_indices = @transform_4, window_bounds = array<i64: 1, 10>}, {transform_indices = @transform_5, window_bounds = array<i64: 8, 10>}]} {
    %c0 = arith.constant 0 : index
    %c0_0 = arith.constant 0 : index
    %0 = vector.load %arg1[%c0, %c0_0] : memref<8x64xf32, #tpu.memory_space<vmem>>, vector<8x64xf32>
    %1 = arith.truncf %0 : vector<8x64xf32> to vector<8x64xbf16>
    %c0_1 = arith.constant 0 : index
    %c0_2 = arith.constant 0 : index
    %2 = vector.load %arg2[%c0_1, %c0_2] : memref<64x256xbf16, #tpu.memory_space<vmem>>, vector<64x256xbf16>
    %cst = arith.constant dense<0.000000e+00> : vector<8x256xf32>
    %3 = tpu.matmul %1, %2, %cst {dimension_numbers = #tpu.dot_dimension_numbers<[1], [0], [0], [1], [0, 0, 1, 1], [], []>} : vector<8x64xbf16>, vector<64x256xbf16>, vector<8x256xf32> -> vector<8x256xf32>
    %4 = arith.truncf %3 : vector<8x256xf32> to vector<8x256xbf16>
    %c0_3 = arith.constant 0 : index
    %c0_4 = arith.constant 0 : index
    %5 = vector.load %arg3[%c0_3, %c0_4] : memref<1x256xf32, #tpu.memory_space<vmem>>, vector<1x256xf32>
    %6 = arith.truncf %5 : vector<1x256xf32> to vector<1x256xbf16>
    %7 = vector.broadcast %6 : vector<1x256xbf16> to vector<8x256xbf16>
    %8 = arith.addf %4, %7 : vector<8x256xbf16>
    %cst_5 = arith.constant 0.000000e+00 : bf16
    %9 = vector.broadcast %cst_5 : bf16 to vector<8x256xbf16>
    %10 = arith.maximumf %8, %9 : vector<8x256xbf16>
    %c0_6 = arith.constant 0 : index
    %c0_7 = arith.constant 0 : index
    %11 = vector.load %arg4[%c0_6, %c0_7] : memref<256x10xbf16, #tpu.memory_space<vmem>>, vector<256x10xbf16>
    %cst_8 = arith.constant dense<0.000000e+00> : vector<8x10xf32>
    %12 = tpu.matmul %10, %11, %cst_8 {dimension_numbers = #tpu.dot_dimension_numbers<[1], [0], [0], [1], [0, 0, 1, 1], [], []>} : vector<8x256xbf16>, vector<256x10xbf16>, vector<8x10xf32> -> vector<8x10xf32>
    %c0_9 = arith.constant 0 : index
    %c0_10 = arith.constant 0 : index
    %13 = vector.load %arg5[%c0_9, %c0_10] : memref<1x10xf32, #tpu.memory_space<vmem>>, vector<1x10xf32>
    %14 = vector.broadcast %13 : vector<1x10xf32> to vector<8x10xf32>
    %15 = arith.addf %12, %14 : vector<8x10xf32>
    %cst_11 = arith.constant dense<0xFF800000> : vector<8xf32>
    %16 = vector.multi_reduction <maximumf>, %15, %cst_11 [1] : vector<8x10xf32> to vector<8xf32>
    %17 = vector.shape_cast %16 : vector<8xf32> to vector<8x1xf32>
    %18 = vector.broadcast %17 : vector<8x1xf32> to vector<8x10xf32>
    %19 = arith.subf %15, %18 : vector<8x10xf32>
    %20 = math.exp %19 : vector<8x10xf32>
    %cst_12 = arith.constant dense<0.000000e+00> : vector<8xf32>
    %21 = vector.multi_reduction <add>, %20, %cst_12 [1] : vector<8x10xf32> to vector<8xf32>
    %22 = vector.shape_cast %21 : vector<8xf32> to vector<8x1xf32>
    %23 = math.log %22 : vector<8x1xf32>
    %24 = vector.broadcast %23 : vector<8x1xf32> to vector<8x10xf32>
    %25 = arith.subf %19, %24 : vector<8x10xf32>
    %c0_13 = arith.constant 0 : index
    %c0_14 = arith.constant 0 : index
    %26 = vector.load %arg6[%c0_13, %c0_14] : memref<8x10xf32, #tpu.memory_space<vmem>>, vector<8x10xf32>
    tpu.vector_store %arg6[%c0_13, %c0_14], %25 {strides = array<i32>} : memref<8x10xf32, #tpu.memory_space<vmem>>, vector<8x10xf32>,
    return
  }
  func.func @transform_0(%arg0: i32) -> (i32, i32) {
    %c0_i32 = arith.constant 0 : i32
    %c0_i32_0 = arith.constant 0 : i32
    return %arg0, %c0_i32 : i32, i32
  }
  func.func @transform_1(%arg0: i32) -> (i32, i32) {
    %c0_i32 = arith.constant 0 : i32
    %c0_i32_0 = arith.constant 0 : i32
    %c0_i32_1 = arith.constant 0 : i32
    return %c0_i32, %c0_i32_0 : i32, i32
  }
  func.func @transform_2(%arg0: i32) -> (i32, i32) {
    %c0_i32 = arith.constant 0 : i32
    %c0_i32_0 = arith.constant 0 : i32
    %c0_i32_1 = arith.constant 0 : i32
    return %c0_i32, %c0_i32_0 : i32, i32
  }
  func.func @transform_3(%arg0: i32) -> (i32, i32) {
    %c0_i32 = arith.constant 0 : i32
    %c0_i32_0 = arith.constant 0 : i32
    %c0_i32_1 = arith.constant 0 : i32
    return %c0_i32, %c0_i32_0 : i32, i32
  }
  func.func @transform_4(%arg0: i32) -> (i32, i32) {
    %c0_i32 = arith.constant 0 : i32
    %c0_i32_0 = arith.constant 0 : i32
    %c0_i32_1 = arith.constant 0 : i32
    return %c0_i32, %c0_i32_0 : i32, i32
  }
  func.func @transform_5(%arg0: i32) -> (i32, i32) {
    %c0_i32 = arith.constant 0 : i32
    %c0_i32_0 = arith.constant 0 : i32
    return %arg0, %c0_i32 : i32, i32
  }
}

</mosaic_0001>

<llo_original>
// kernel: classification_forward.1
$region0: #{classification_forward.1}
  #allocation0 [shape = 'u32[]', space=smem, size = 0x4, offset = 0x4, fixed_abs, tag = 'smem constant byte address 0x4 - core index']
  #allocation1 [shape = 'u32[144,128]{1,0:T(1,128)}', space=vmem, size = 0x12000, scoped, tag = 'internal scratch']
  %s0 = inlined_call_operand.vmem [shape: f32[8,64], index: 0, kind: input, shape index: {}]
  %s1 = inlined_call_operand.vmem [shape: bf16[64,256], index: 1, kind: input, shape index: {}]
  %s2 = inlined_call_operand.vmem [shape: f32[1,256], index: 2, kind: input, shape index: {}]
  %s3 = inlined_call_operand.vmem [shape: bf16[256,10], index: 3, kind: input, shape index: {}]
  %s4 = inlined_call_operand.vmem [shape: f32[1,10], index: 4, kind: input, shape index: {}]
  %s5 = inlined_call_operand.hbm [shape: f32[8,10], index: 5, kind: output, shape index: {}]
  %s6 = sld [smem:[#allocation0]]
  $region30: #{classification_forward.1} parent=0
    _
  %s8 = ssub.s32 1, %s6
  %s9 = scalar_select 0, %s8, %s6
  $region1: #{classification_forward.1} parent=0
    #allocation2 [shape = 'u8[4096]{0}', space=vmem, size = 0x1000, scoped, tag = 'output window, operand 0, single buffered']
    #allocation3 [shape = 's32[1]{0}', space=sflag, size = 0x4, scoped, tag = 'scoped memory for classification_forward.1']
    %10 = vsyncpa [#allocation3], 0
    // Predicated region
    $region2: #{classification_forward.1} parent=1 // pred_check
      _
    $region3: #{classification_forward.1} parent=1 // pred_check_branch
      %12 = sbr.rel (0) target = $region5
    $region4: #{classification_forward.1} parent=1 // pred_region
      _
    $region5: #{classification_forward.1} parent=1 // pred_fallthru
      _
    // Predicated region
    $region6: #{classification_forward.1} parent=1 // pred_check
      _
    $region7: #{classification_forward.1} parent=1 // pred_check_branch
      %14 = sbr.rel (0) target = $region9
    $region8: #{classification_forward.1} parent=1 // pred_region
      _
    $region9: #{classification_forward.1} parent=1 // pred_fallthru
      _
    // Predicated region
    $region10: #{classification_forward.1} parent=1 // pred_check
      _
    $region11: #{classification_forward.1} parent=1 // pred_check_branch
      %16 = sbr.rel (0) target = $region13
    $region12: #{classification_forward.1} parent=1 // pred_region
      _
    $region13: #{classification_forward.1} parent=1 // pred_fallthru
      _
    // Predicated region
    $region14: #{classification_forward.1} parent=1 // pred_check
      _
    $region15: #{classification_forward.1} parent=1 // pred_check_branch
      %18 = sbr.rel (0) target = $region17
    $region16: #{classification_forward.1} parent=1 // pred_region
      _
    $region17: #{classification_forward.1} parent=1 // pred_fallthru
      _
    // Predicated region
    $region18: #{classification_forward.1} parent=1 // pred_check
      _
    $region19: #{classification_forward.1} parent=1 // pred_check_branch
      %20 = sbr.rel (0) target = $region21
    $region20: #{classification_forward.1} parent=1 // pred_region
      _
    $region21: #{classification_forward.1} parent=1 // pred_fallthru
      _
    %v22 = vld [vmem:[%s0] sm:$0xff]
    %v23 = vpack.c.bf16 %v22, %v22
    %v24 = vld [vmem:[%s1] sm:$0xff]
    %v25 = vld [vmem:[%s1 + $0x8] sm:$0xff]
    %v26 = vld [vmem:[%s1 + $0x10] sm:$0xff]
    %v27 = vld [vmem:[%s1 + $0x18] sm:$0xff]
    %v28 = vld [vmem:[%s1 + $0x20] sm:$0xff]
    %v29 = vld [vmem:[%s1 + $0x28] sm:$0xff]
    %v30 = vld [vmem:[%s1 + $0x30] sm:$0xff]
    %v31 = vld [vmem:[%s1 + $0x38] sm:$0xff]
    %v40 = vunpack.c.l.b16 %v24
    %v41 = vunpack.c.h.b16 %v24
    %v42 = vunpack.c.l.b16 %v25
    %v43 = vunpack.c.h.b16 %v25
    %v44 = vunpack.c.l.b16 %v26
    %v45 = vunpack.c.h.b16 %v26
    %v46 = vunpack.c.l.b16 %v27
    %v47 = vunpack.c.h.b16 %v27
    %v48 = vunpack.c.l.b16 %v28
    %v49 = vunpack.c.h.b16 %v28
    %v50 = vunpack.c.l.b16 %v29
    %v51 = vunpack.c.h.b16 %v29
    %v52 = vunpack.c.l.b16 %v30
    %v53 = vunpack.c.h.b16 %v30
    %v54 = vunpack.c.l.b16 %v31
    %v55 = vunpack.c.h.b16 %v31
    %v56 = vpack.c.b16 %v42, %v40
    %v57 = vpack.c.b16 %v43, %v41
    %v58 = vpack.c.b16 %v46, %v44
    %v59 = vpack.c.b16 %v47, %v45
    %v60 = vpack.c.b16 %v50, %v48
    %v61 = vpack.c.b16 %v51, %v49
    %v62 = vpack.c.b16 %v54, %v52
    %v63 = vpack.c.b16 %v55, %v53
    %vm72 = vcmask 523264
    %v74 = vsel %vm72, %v23, 0
    %76 = vmatprep.subr.bf16.mxu0 %v57
    %77 = vmatpush1.bf16.msra.mxu0 %v56
    %78 = vmatprep.subr.bf16.mxu0 %v59
    %79 = vmatpush1.bf16.msra.mxu0 %v58
    %80 = vmatprep.subr.bf16.mxu0 %v61
    %81 = vmatpush1.bf16.msra.mxu0 %v60
    %82 = vmatprep.subr.bf16.mxu0 %v63
    %83 = vmatpush1.bf16.msra.mxu0 %v62
    %84 = vmatprep.subr.bf16.mxu0 0
    %85 = vmatpush1.bf16.msra.mxu0 0
    %86 = vmatprep.subr.bf16.mxu0 0
    %87 = vmatpush1.bf16.msra.mxu0 0
    %88 = vmatprep.subr.bf16.mxu0 0
    %89 = vmatpush1.bf16.msra.mxu0 0
    %90 = vmatprep.subr.bf16.mxu0 0
    %91 = vmatpush1.bf16.msra.mxu0 0
    %92 = vmatprep.subr.bf16.mxu0 0
    %93 = vmatpush1.bf16.msra.mxu0 0
    %94 = vmatprep.subr.bf16.mxu0 0
    %95 = vmatpush1.bf16.msra.mxu0 0
    %96 = vmatprep.subr.bf16.mxu0 0
    %97 = vmatpush1.bf16.msra.mxu0 0
    %98 = vmatprep.subr.bf16.mxu0 0
    %99 = vmatpush1.bf16.msra.mxu0 0
    %100 = vmatprep.subr.bf16.mxu0 0
    %101 = vmatpush1.bf16.msra.mxu0 0
    %102 = vmatprep.subr.bf16.mxu0 0
    %103 = vmatpush1.bf16.msra.mxu0 0
    %104 = vmatprep.subr.bf16.mxu0 0
    %105 = vmatpush1.bf16.msra.mxu0 0
    %106 = vmatprep.subr.bf16.mxu0 0
    %107 = vmatpush1.bf16.msra.mxu0 0
    %108 = vmatprep.mubr.bf16.mxu0 0
    %109 = vmatmul.mubr.bf16.gmra.mrb[0].mxu0 %v74
    %v110 = vpop.f32.mrb[0].mxu0
    %v111 = vadd.f32 0.0, %v110
    %v112 = vpop.f32.mrb[0].mxu0
    %v113 = vadd.f32 0.0, %v112
    %v114 = vpop.f32.mrb[0].mxu0
    %v115 = vpop.f32.mrb[0].mxu0
    %116 = vdwg.mxu0
    %v117 = vpack.c.bf16 %v111, %v111
    %v118 = vpack.c.bf16 %v113, %v113
    %v119 = vld [vmem:[%s2] sm:$0x3]
    %v121 = vlaneseq
    %v122 = vshrl.u32 %v121, 7
    %v123 = vsub.s32 0, %v122
    %v124 = vrot.slane %v119, %v123
    %v125 = vlaneseq
    %v126 = vshrl.u32 %v125, 7
    %v127 = vsub.s32 1, %v126
    %v128 = vrot.slane %v119, %v127
    %v131 = vpack.c.bf16 %v124, %v124
    %v132 = vpack.c.bf16 %v128, %v128
    %v134 = vpack.i.b16 %v131, %v131
    %v136 = vlaneseq
    %v137 = vshrl.u32 %v136, 7
    %v138 = vsub.s32 0, %v137
    %v139 = vrot.slane %v134, %v138
    %v141 = vpack.i.b16 %v132, %v132
    %v143 = vlaneseq
    %v144 = vshrl.u32 %v143, 7
    %v145 = vsub.s32 0, %v144
    %v146 = vrot.slane %v141, %v145
    %v147 = vadd.bf16 %v117, %v139
    %v148 = vadd.bf16 %v118, %v146
    %v149 = vmax.bf16 %v147, 0
    %v150 = vmax.bf16 %v148, 0
    %v151 = vld [vmem:[%s3] sm:$0xf]
    %v152 = vld [vmem:[%s3 + $0x4] sm:$0xf]
    %v153 = vld [vmem:[%s3 + $0x8] sm:$0xf]
    %v154 = vld [vmem:[%s3 + $0xc] sm:$0xf]
    %v155 = vld [vmem:[%s3 + $0x10] sm:$0xf]
    %v156 = vld [vmem:[%s3 + $0x14] sm:$0xf]
    %v157 = vld [vmem:[%s3 + $0x18] sm:$0xf]
    %v158 = vld [vmem:[%s3 + $0x1c] sm:$0xf]
    %v159 = vld [vmem:[%s3 + $0x20] sm:$0xf]
    %v160 = vld [vmem:[%s3 + $0x24] sm:$0xf]
    %v161 = vld [vmem:[%s3 + $0x28] sm:$0xf]
    %v162 = vld [vmem:[%s3 + $0x2c] sm:$0xf]
    %v163 = vld [vmem:[%s3 + $0x30] sm:$0xf]
    %v164 = vld [vmem:[%s3 + $0x34] sm:$0xf]
    %v165 = vld [vmem:[%s3 + $0x38] sm:$0xf]
    %v166 = vld [vmem:[%s3 + $0x3c] sm:$0xf]
    %v167 = vld [vmem:[%s3 + $0x40] sm:$0xf]
    %v168 = vld [vmem:[%s3 + $0x44] sm:$0xf]
    %v169 = vld [vmem:[%s3 + $0x48] sm:$0xf]
    %v170 = vld [vmem:[%s3 + $0x4c] sm:$0xf]
    %v171 = vld [vmem:[%s3 + $0x50] sm:$0xf]
    %v172 = vld [vmem:[%s3 + $0x54] sm:$0xf]
    %v173 = vld [vmem:[%s3 + $0x58] sm:$0xf]
    %v174 = vld [vmem:[%s3 + $0x5c] sm:$0xf]
    %v175 = vld [vmem:[%s3 + $0x60] sm:$0xf]
    %v176 = vld [vmem:[%s3 + $0x64] sm:$0xf]
    %v177 = vld [vmem:[%s3 + $0x68] sm:$0xf]
    %v178 = vld [vmem:[%s3 + $0x6c] sm:$0xf]
    %v179 = vld [vmem:[%s3 + $0x70] sm:$0xf]
    %v180 = vld [vmem:[%s3 + $0x74] sm:$0xf]
    %v181 = vld [vmem:[%s3 + $0x78] sm:$0xf]
    %v182 = vld [vmem:[%s3 + $0x7c] sm:$0xf]
    %v183 = vld [vmem:[%s4] sm:$0x1]
    %v185 = vlaneseq
    %v186 = vshrl.u32 %v185, 7
    %v187 = vsub.s32 0, %v186
    %v188 = vrot.slane %v183, %v187
    %v222 = vunpack.c.l.b16 %v151
    %v223 = vunpack.c.l.b16 %v152
    %v224 = vunpack.c.l.b16 %v153
    %v225 = vunpack.c.l.b16 %v154
    %v226 = vunpack.c.l.b16 %v155
    %v227 = vunpack.c.l.b16 %v156
    %v228 = vunpack.c.l.b16 %v157
    %v229 = vunpack.c.l.b16 %v158
    %v230 = vunpack.c.l.b16 %v159
    %v231 = vunpack.c.l.b16 %v160
    %v232 = vunpack.c.l.b16 %v161
    %v233 = vunpack.c.l.b16 %v162
    %v234 = vunpack.c.l.b16 %v163
    %v235 = vunpack.c.l.b16 %v164
    %v236 = vunpack.c.l.b16 %v165
    %v237 = vunpack.c.l.b16 %v166
    %v238 = vunpack.c.l.b16 %v167
    %v239 = vunpack.c.l.b16 %v168
    %v240 = vunpack.c.l.b16 %v169
    %v241 = vunpack.c.l.b16 %v170
    %v242 = vunpack.c.l.b16 %v171
    %v243 = vunpack.c.l.b16 %v172
    %v244 = vunpack.c.l.b16 %v173
    %v245 = vunpack.c.l.b16 %v174
    %v246 = vunpack.c.l.b16 %v175
    %v247 = vunpack.c.l.b16 %v176
    %v248 = vunpack.c.l.b16 %v177
    %v249 = vunpack.c.l.b16 %v178
    %v250 = vunpack.c.l.b16 %v179
    %v251 = vunpack.c.l.b16 %v180
    %v252 = vunpack.c.l.b16 %v181
    %v253 = vunpack.c.l.b16 %v182
    %v254 = vpack.c.b16 %v223, %v222
    %v255 = vpack.c.b16 %v225, %v224
    %v256 = vpack.c.b16 %v227, %v226
    %v257 = vpack.c.b16 %v229, %v228
    %v258 = vpack.c.b16 %v231, %v230
    %v259 = vpack.c.b16 %v233, %v232
    %v260 = vpack.c.b16 %v235, %v234
    %v261 = vpack.c.b16 %v237, %v236
    %v262 = vpack.c.b16 %v239, %v238
    %v263 = vpack.c.b16 %v241, %v240
    %v264 = vpack.c.b16 %v243, %v242
    %v265 = vpack.c.b16 %v245, %v244
    %v266 = vpack.c.b16 %v247, %v246
    %v267 = vpack.c.b16 %v249, %v248
    %v268 = vpack.c.b16 %v251, %v250
    %v269 = vpack.c.b16 %v253, %v252
    %286 = vmatprep.subr.bf16.mxu0 0
    %287 = vmatpush1.bf16.msra.mxu0 %v254
    %288 = vmatprep.subr.bf16.mxu0 0
    %289 = vmatpush1.bf16.msra.mxu0 %v255
    %290 = vmatprep.subr.bf16.mxu0 0
    %291 = vmatpush1.bf16.msra.mxu0 %v256
    %292 = vmatprep.subr.bf16.mxu0 0
    %293 = vmatpush1.bf16.msra.mxu0 %v257
    %294 = vmatprep.subr.bf16.mxu0 0
    %295 = vmatpush1.bf16.msra.mxu0 %v258
    %296 = vmatprep.subr.bf16.mxu0 0
    %297 = vmatpush1.bf16.msra.mxu0 %v259
    %298 = vmatprep.subr.bf16.mxu0 0
    %299 = vmatpush1.bf16.msra.mxu0 %v260
    %300 = vmatprep.subr.bf16.mxu0 0
    %301 = vmatpush1.bf16.msra.mxu0 %v261
    %302 = vmatprep.subr.bf16.mxu0 0
    %303 = vmatpush1.bf16.msra.mxu0 %v262
    %304 = vmatprep.subr.bf16.mxu0 0
    %305 = vmatpush1.bf16.msra.mxu0 %v263
    %306 = vmatprep.subr.bf16.mxu0 0
    %307 = vmatpush1.bf16.msra.mxu0 %v264
    %308 = vmatprep.subr.bf16.mxu0 0
    %309 = vmatpush1.bf16.msra.mxu0 %v265
    %310 = vmatprep.subr.bf16.mxu0 0
    %311 = vmatpush1.bf16.msra.mxu0 %v266
    %312 = vmatprep.subr.bf16.mxu0 0
    %313 = vmatpush1.bf16.msra.mxu0 %v267
    %314 = vmatprep.subr.bf16.mxu0 0
    %315 = vmatpush1.bf16.msra.mxu0 %v268
    %316 = vmatprep.subr.bf16.mxu0 0
    %317 = vmatpush1.bf16.msra.mxu0 %v269
    %318 = vmatprep.mubr.bf16.mxu0 %v150
    %319 = vmatmul.mubr.bf16.gmra.mrb[0].mxu0 %v149
    %v320 = vpop.f32.mrb[0].mxu0
    %v321 = vadd.f32 %v188, %v320
    %v322 = vpop.f32.mrb[0].mxu0
    %v323 = vpop.f32.mrb[0].mxu0
    %v324 = vpop.f32.mrb[0].mxu0
    %325 = vdwg.mxu0
    %vm326 = vcmask 80896
    %v327 = vsel %vm326, %v321, -inf
    %328 = vmax.xlane.f32.xlu0 %v327
    %v329 = vpop.xlane.xlu0 %328
    %v330 = vsub.f32 %v321, %v329
    %v331 = vmul.f32 %v330, 1.442695
    %v332 = vpow.pop %v331
    %v333 = vsel %vm326, %v332, 0.0
    %334 = vadd.xlane.f32.xlu0 %v333
    %v335 = vpop.xlane.xlu0 %334
    %v336 = vlog2.pop %v335
    %v337 = vmul.f32 %v336, 0.6931472
    %v338 = vsub.f32 %v330, %v337
    %339 = vst.msk [vmem:[#allocation2] sm:$0xff] %vm326, %v338
    // Predicated region
    $region22: #{classification_forward.1} parent=1 // pred_check
      _
    $region23: #{classification_forward.1} parent=1 // pred_check_branch
      %341 = sbr.rel (0) target = $region25
    $region24: #{classification_forward.1} parent=1 // pred_region
      %s343 = ssub.s32 128, 128
      %344 = vsyncadd [#allocation3], %s343
      %s346 = sshll.u32 [#allocation2], 4
      %s347 = int_to_ptr.vmem [resolvable:$true] %s346
      %349 = dma.vmem_to_hbm [thread:$0]  %s347, 128, %s5, [#allocation3]
    $region25: #{classification_forward.1} parent=1 // pred_fallthru
      _
    // Predicated region
    $region26: #{classification_forward.1} parent=1 // pred_check
      _
    $region27: #{classification_forward.1} parent=1 // pred_check_branch
      %351 = sbr.rel (0) target = $region29
    $region28: #{classification_forward.1} parent=1 // pred_region
      %352 = dma.done [#allocation3], 128
    $region29: #{classification_forward.1} parent=1 // pred_fallthru
      _
    %353 = vsyncpa [#allocation3], 1

</llo_original>
